<compile_context>
chip_gen: v7x
topology: tpu7x:2x2x1
jax: 0.10.0
libtpu: 0.0.40
codegen_flags: <defaults>
</compile_context>

<pallas_src>
import functools

import jax
import jax.numpy as jnp
from jax.experimental import pallas as pl
from jax.experimental.pallas import tpu as pltpu


def _round_up(x, m):
    return ((x + m - 1) // m) * m


def _metapath_kernel(x_ref, w_ref, b_ref, o_ref, *, path_num, latent_dim):
    # x_ref: (TB, P*K)   dense batch slab (no lane padding)
    # w_ref: (P*K, P*L)  block-diagonal Conv1d weight (one dot covers all paths)
    # b_ref: (1, L)      Conv1d bias
    # o_ref: (TB, L)     max-over-paths output
    y = jnp.dot(x_ref[...], w_ref[...],
                preferred_element_type=jnp.float32)          # (TB, P*L) on MXU
    acc = y[:, :latent_dim]
    for p in range(1, path_num):                             # static unroll, VPU max
        acc = jnp.maximum(acc, y[:, p * latent_dim:(p + 1) * latent_dim])
    # max_p relu(z_p + b) == relu(max_p z_p + b): bias + ReLU applied once.
    # TODO(synk): dropout is identity in eval mode; training-mode dropout not modeled.
    o_ref[...] = jnp.maximum(acc + b_ref[...], 0.0).astype(o_ref.dtype)


def metapath_embedding(x, conv_weight, conv_bias, path_num, hop_num,
                       feature_size, latent_dim, *, batch_tile=2048):
    """x: any shape viewable as (B, path_num, hop_num, feature_size)
       conv_weight: (latent_dim, feature_size, hop_num)   (PyTorch Conv1d layout)
       conv_bias:   (latent_dim,)
       returns: (B, 1, latent_dim) float32"""
    P, H, F, L = path_num, hop_num, feature_size, latent_dim
    K = H * F

    x_flat = jnp.asarray(x)
    if not jnp.issubdtype(x_flat.dtype, jnp.floating):
        x_flat = x_flat.astype(jnp.float32)
    # Pure reshape of the contiguous input -> (B, P*K).  No jnp.pad, no extra
    # HBM pass; bf16 inputs (if the caller supplies them) stream at half width.
    x_flat = x_flat.reshape(-1, P * K)
    B = x_flat.shape[0]

    # Block-diagonal weight: W_bd[p*K + h*F + f, p*L + l] = conv_weight[l, f, h].
    w_mat = jnp.transpose(jnp.asarray(conv_weight, jnp.float32),
                          (2, 1, 0)).reshape(K, L)                    # (K, L)
    w_bd = jnp.zeros((P * K, P * L), jnp.float32)
    for p in range(P):
        w_bd = w_bd.at[p * K:(p + 1) * K, p * L:(p + 1) * L].set(w_mat)
    b_mat = jnp.asarray(conv_bias, jnp.float32).reshape(1, L)

    # Batch tiling: never round B up to TB.  For B > 8, pick TB (multiple of 8,
    # capped at batch_tile) so the grid has ~8 steps; the last block may be
    # ragged (Pallas masks out-of-range output rows; each output row depends
    # only on its own input row, so garbage pad rows are harmless).
    if B <= 8:
        TB = B                                   # single full block, grid = 1
    else:
        TB = max(8, min(batch_tile, _round_up(pl.cdiv(B, 8), 8)))
    grid = (pl.cdiv(B, TB),)

    kernel = functools.partial(_metapath_kernel, path_num=P, latent_dim=L)

    cost = pl.CostEstimate(
        flops=2 * B * (P * K) * (P * L),
        transcendentals=0,
        bytes_accessed=(x_flat.dtype.itemsize * B * P * K
                        + 4 * (P * K * P * L + L + B * L)),
    )

    out2d = pl.pallas_call(
        kernel,
        out_shape=jax.ShapeDtypeStruct((B, L), jnp.float32),
        grid_spec=pltpu.PrefetchScalarGridSpec(
            num_scalar_prefetch=0,
            grid=grid,
            in_specs=[
                pl.BlockSpec((TB, P * K), lambda i: (i, 0)),      # streamed x slab
                pl.BlockSpec((P * K, P * L), lambda i: (0, 0)),   # resident weight
                pl.BlockSpec((1, L), lambda i: (0, 0)),           # resident bias
            ],
            out_specs=pl.BlockSpec((TB, L), lambda i: (i, 0)),
        ),
        compiler_params=pltpu.CompilerParams(
            dimension_semantics=("parallel",)),
        cost_estimate=cost,
    )(x_flat, w_bd, b_mat)

    return out2d.reshape(B, 1, L)


def _reference(x, conv_weight, conv_bias):
    # Pure-JAX reference of the PyTorch forward (eval mode).
    y = jnp.einsum('bphf,lfh->bpl', x, conv_weight) + conv_bias[None, None, :]
    y = jnp.maximum(y, 0.0)
    return jnp.max(y, axis=1, keepdims=True)


if __name__ == "__main__":
    path_num, hop_num, feature_size, latent_dim = 3, 3, 32, 16

    key = jax.random.PRNGKey(0)
    k_x, k_w, k_b, k_x2 = jax.random.split(key, 4)

    # Deterministic parameter init (xavier_uniform for conv weight, uniform bias).
    fan_in = feature_size * hop_num
    fan_out = latent_dim * hop_num
    limit_w = (6.0 / (fan_in + fan_out)) ** 0.5
    conv_weight = jax.random.uniform(
        k_w, (latent_dim, feature_size, hop_num),
        minval=-limit_w, maxval=limit_w, dtype=jnp.float32)
    limit_b = 1.0 / (fan_in ** 0.5)
    conv_bias = jax.random.uniform(
        k_b, (latent_dim,), minval=-limit_b, maxval=limit_b, dtype=jnp.float32)

    # Case 1: tiny batch (single full block, grid = 1).
    B = 2
    x = jax.random.normal(
        k_x, (B, path_num, hop_num, feature_size), dtype=jnp.float32)
    out = metapath_embedding(x, conv_weight, conv_bias,
                             path_num, hop_num, feature_size, latent_dim)
    out = jax.block_until_ready(out)
    ref = _reference(x, conv_weight, conv_bias)
    assert out.shape == (B, 1, latent_dim), out.shape
    assert jnp.allclose(out, ref, atol=1e-5, rtol=1e-5), "mismatch vs reference (B=2)"

    # Case 2: batch not a multiple of the tile (exercises cdiv grid + ragged last block).
    B2 = 37
    x2 = jax.random.normal(
        k_x2, (B2, path_num, hop_num, feature_size), dtype=jnp.float32)
    out2 = metapath_embedding(x2, conv_weight, conv_bias,
                              path_num, hop_num, feature_size, latent_dim)
    out2 = jax.block_until_ready(out2)
    ref2 = _reference(x2, conv_weight, conv_bias)
    assert out2.shape == (B2, 1, latent_dim), out2.shape
    assert jnp.allclose(out2, ref2, atol=1e-5, rtol=1e-5), "mismatch vs reference (B=37)"

    print("KERNEL_OK")
</pallas_src>

<mosaic_0001>
module attributes {stable_mosaic.version = 11 : i64} {
  func.func @_metapath_kernel(%arg0: i32, %arg1: memref<2x288xf32, #tpu.memory_space<vmem>>, %arg2: memref<288x48xf32, #tpu.memory_space<vmem>>, %arg3: memref<1x16xf32, #tpu.memory_space<vmem>>, %arg4: memref<2x16xf32, #tpu.memory_space<vmem>>) attributes {dimension_semantics = [#tpu.dimension_semantics<parallel>], iteration_bounds = array<i64: 1>, scalar_prefetch = 0 : i64, scratch_operands = 0 : i64, tpu.core_type = #tpu.core_type<tc>, window_params = [{transform_indices = @transform_0, window_bounds = array<i64: 2, 288>}, {pipeline_mode = #tpu.pipeline_mode<synchronous>, transform_indices = @transform_1, window_bounds = array<i64: 288, 48>}, {pipeline_mode = #tpu.pipeline_mode<synchronous>, transform_indices = @transform_2, window_bounds = array<i64: 1, 16>}, {transform_indices = @transform_3, window_bounds = array<i64: 2, 16>}]} {
    %c0 = arith.constant 0 : index
    %c0_0 = arith.constant 0 : index
    %0 = vector.load %arg1[%c0, %c0_0] : memref<2x288xf32, #tpu.memory_space<vmem>>, vector<2x288xf32>
    %c0_1 = arith.constant 0 : index
    %c0_2 = arith.constant 0 : index
    %1 = vector.load %arg2[%c0_1, %c0_2] : memref<288x48xf32, #tpu.memory_space<vmem>>, vector<288x48xf32>
    %cst = arith.constant dense<0.000000e+00> : vector<2x48xf32>
    %2 = tpu.matmul %0, %1, %cst {dimension_numbers = #tpu.dot_dimension_numbers<[1], [0], [0], [1], [0, 0, 1, 1], [], []>} : vector<2x288xf32>, vector<288x48xf32>, vector<2x48xf32> -> vector<2x48xf32>
    %3 = vector.extract_strided_slice %2 {offsets = [0, 0], sizes = [2, 16], strides = [1, 1]} : vector<2x48xf32> to vector<2x16xf32>
    %4 = vector.extract_strided_slice %2 {offsets = [0, 16], sizes = [2, 16], strides = [1, 1]} : vector<2x48xf32> to vector<2x16xf32>
    %5 = arith.maximumf %3, %4 : vector<2x16xf32>
    %6 = vector.extract_strided_slice %2 {offsets = [0, 32], sizes = [2, 16], strides = [1, 1]} : vector<2x48xf32> to vector<2x16xf32>
    %7 = arith.maximumf %5, %6 : vector<2x16xf32>
    %c0_3 = arith.constant 0 : index
    %c0_4 = arith.constant 0 : index
    %8 = vector.load %arg3[%c0_3, %c0_4] : memref<1x16xf32, #tpu.memory_space<vmem>>, vector<1x16xf32>
    %9 = vector.broadcast %8 : vector<1x16xf32> to vector<2x16xf32>
    %10 = arith.addf %7, %9 : vector<2x16xf32>
    %cst_5 = arith.constant 0.000000e+00 : f32
    %11 = vector.broadcast %cst_5 : f32 to vector<2x16xf32>
    %12 = arith.maximumf %10, %11 : vector<2x16xf32>
    %c0_6 = arith.constant 0 : index
    %c0_7 = arith.constant 0 : index
    %13 = vector.load %arg4[%c0_6, %c0_7] : memref<2x16xf32, #tpu.memory_space<vmem>>, vector<2x16xf32>
    tpu.vector_store %arg4[%c0_6, %c0_7], %12 {strides = array<i32>} : memref<2x16xf32, #tpu.memory_space<vmem>>, vector<2x16xf32>,
    return
  }
  func.func @transform_0(%arg0: i32) -> (i32, i32) {
    %c0_i32 = arith.constant 0 : i32
    %c0_i32_0 = arith.constant 0 : i32
    return %arg0, %c0_i32 : i32, i32
  }
  func.func @transform_1(%arg0: i32) -> (i32, i32) {
    %c0_i32 = arith.constant 0 : i32
    %c0_i32_0 = arith.constant 0 : i32
    %c0_i32_1 = arith.constant 0 : i32
    return %c0_i32, %c0_i32_0 : i32, i32
  }
  func.func @transform_2(%arg0: i32) -> (i32, i32) {
    %c0_i32 = arith.constant 0 : i32
    %c0_i32_0 = arith.constant 0 : i32
    %c0_i32_1 = arith.constant 0 : i32
    return %c0_i32, %c0_i32_0 : i32, i32
  }
  func.func @transform_3(%arg0: i32) -> (i32, i32) {
    %c0_i32 = arith.constant 0 : i32
    %c0_i32_0 = arith.constant 0 : i32
    return %arg0, %c0_i32 : i32, i32
  }
}

</mosaic_0001>

<llo_original>
// kernel: tpu_custom_call.1
$region0: #{tpu_custom_call.1}
  #allocation0 [shape = 'u32[]', space=smem, size = 0x4, offset = 0x4, fixed_abs, tag = 'smem constant byte address 0x4 - core index']
  #allocation1 [shape = 'u32[144,128]{1,0:T(1,128)}', space=vmem, size = 0x12000, scoped, tag = 'internal scratch']
  %s0 = inlined_call_operand.vmem [shape: f32[2,288], index: 0, kind: input, shape index: {}]
  %s1 = inlined_call_operand.vmem [shape: f32[288,48], index: 1, kind: input, shape index: {}]
  %s2 = inlined_call_operand.vmem [shape: f32[1,16], index: 2, kind: input, shape index: {}]
  %s3 = inlined_call_operand.hbm [shape: f32[2,16], index: 3, kind: output, shape index: {}]
  %s4 = sld [smem:[#allocation0]]
  $region22: #{tpu_custom_call.1} parent=0
    _
  %s6 = ssub.s32 1, %s4
  %s7 = scalar_select 0, %s6, %s4
  $region1: #{tpu_custom_call.1} parent=0
    #allocation2 [shape = 'u8[1024]{0}', space=vmem, size = 0x400, scoped, tag = 'output window, operand 0, single buffered']
    #allocation3 [shape = 's32[1]{0}', space=sflag, size = 0x4, scoped, tag = 'scoped memory for tpu_custom_call.1']
    %8 = vsyncpa [#allocation3], 0
    // Predicated region
    $region2: #{tpu_custom_call.1} parent=1 // pred_check
      _
    $region3: #{tpu_custom_call.1} parent=1 // pred_check_branch
      %10 = sbr.rel (0) target = $region5
    $region4: #{tpu_custom_call.1} parent=1 // pred_region
      _
    $region5: #{tpu_custom_call.1} parent=1 // pred_fallthru
      _
    // Predicated region
    $region6: #{tpu_custom_call.1} parent=1 // pred_check
      _
    $region7: #{tpu_custom_call.1} parent=1 // pred_check_branch
      %12 = sbr.rel (0) target = $region9
    $region8: #{tpu_custom_call.1} parent=1 // pred_region
      _
    $region9: #{tpu_custom_call.1} parent=1 // pred_fallthru
      _
    // Predicated region
    $region10: #{tpu_custom_call.1} parent=1 // pred_check
      _
    $region11: #{tpu_custom_call.1} parent=1 // pred_check_branch
      %14 = sbr.rel (0) target = $region13
    $region12: #{tpu_custom_call.1} parent=1 // pred_region
      _
    $region13: #{tpu_custom_call.1} parent=1 // pred_fallthru
      _
    %v15 = vld [vmem:[%s0] sm:$0x3f]
    %v16 = vld [vmem:[%s1] sm:$0xff]
    %v17 = vld [vmem:[%s1 + $0x8] sm:$0xff]
    %v18 = vld [vmem:[%s1 + $0x10] sm:$0xff]
    %v19 = vld [vmem:[%s1 + $0x18] sm:$0xff]
    %v20 = vld [vmem:[%s1 + $0x20] sm:$0xff]
    %v21 = vld [vmem:[%s1 + $0x28] sm:$0xff]
    %v22 = vld [vmem:[%s1 + $0x30] sm:$0xff]
    %v23 = vld [vmem:[%s1 + $0x38] sm:$0xff]
    %v24 = vld [vmem:[%s1 + $0x40] sm:$0xff]
    %v25 = vld [vmem:[%s1 + $0x48] sm:$0xff]
    %v26 = vld [vmem:[%s1 + $0x50] sm:$0xff]
    %v27 = vld [vmem:[%s1 + $0x58] sm:$0xff]
    %v28 = vld [vmem:[%s1 + $0x60] sm:$0xff]
    %v29 = vld [vmem:[%s1 + $0x68] sm:$0xff]
    %v30 = vld [vmem:[%s1 + $0x70] sm:$0xff]
    %v31 = vld [vmem:[%s1 + $0x78] sm:$0xff]
    %v32 = vld [vmem:[%s1 + $0x80] sm:$0xff]
    %v33 = vld [vmem:[%s1 + $0x88] sm:$0xff]
    %v34 = vld [vmem:[%s1 + $0x90] sm:$0xff]
    %v35 = vld [vmem:[%s1 + $0x98] sm:$0xff]
    %v36 = vld [vmem:[%s1 + $0xa0] sm:$0xff]
    %v37 = vld [vmem:[%s1 + $0xa8] sm:$0xff]
    %v38 = vld [vmem:[%s1 + $0xb0] sm:$0xff]
    %v39 = vld [vmem:[%s1 + $0xb8] sm:$0xff]
    %v40 = vld [vmem:[%s1 + $0xc0] sm:$0xff]
    %v41 = vld [vmem:[%s1 + $0xc8] sm:$0xff]
    %v42 = vld [vmem:[%s1 + $0xd0] sm:$0xff]
    %v43 = vld [vmem:[%s1 + $0xd8] sm:$0xff]
    %v44 = vld [vmem:[%s1 + $0xe0] sm:$0xff]
    %v45 = vld [vmem:[%s1 + $0xe8] sm:$0xff]
    %v46 = vld [vmem:[%s1 + $0xf0] sm:$0xff]
    %v47 = vld [vmem:[%s1 + $0xf8] sm:$0xff]
    %v48 = vld [vmem:[%s1 + $0x100] sm:$0xff]
    %v49 = vld [vmem:[%s1 + $0x108] sm:$0xff]
    %v50 = vld [vmem:[%s1 + $0x110] sm:$0xff]
    %v51 = vld [vmem:[%s1 + $0x118] sm:$0xff]
    %v53 = vcombine.high %v15, %v15
    %v55 = vunpack.c.l.s4 1983009808
    %v56 = vunpack.c.0.s8 %v55
    %v57 = vlaneseq
    %v58 = vshrl.u32 %v57, 7
    %v59 = vsub.s32 %v56, %v58
    %v60 = vrot.slane %v15, %v59
    %v62 = vunpack.c.l.s4 1983009808
    %v63 = vunpack.c.0.s8 %v62
    %v64 = vlaneseq
    %v65 = vshrl.u32 %v64, 7
    %v66 = vsub.s32 %v63, %v65
    %v67 = vrot.slane %v53, %v66
    %v68 = vcombine.high %v60, %v60
    %vm71 = vcmask 261120
    %v72 = vsel %vm71, %v67, 0
    %74 = vmatprep.subr.mxu0 0.0
    %75 = vmatpush1.msra.mxu0 %v16
    %76 = vmatprep.subr.mxu0 0.0
    %77 = vmatpush1.msra.mxu0 %v17
    %78 = vmatprep.subr.mxu0 0.0
    %79 = vmatpush1.msra.mxu0 %v18
    %80 = vmatprep.subr.mxu0 0.0
    %81 = vmatpush1.msra.mxu0 %v19
    %82 = vmatprep.subr.mxu0 0.0
    %83 = vmatpush1.msra.mxu0 %v20
    %84 = vmatprep.subr.mxu0 0.0
    %85 = vmatpush1.msra.mxu0 %v21
    %86 = vmatprep.subr.mxu0 0.0
    %87 = vmatpush1.msra.mxu0 %v22
    %88 = vmatprep.subr.mxu0 0.0
    %89 = vmatpush1.msra.mxu0 %v23
    %90 = vmatprep.subr.mxu0 0.0
    %91 = vmatpush1.msra.mxu0 %v24
    %92 = vmatprep.subr.mxu0 0.0
    %93 = vmatpush1.msra.mxu0 %v25
    %94 = vmatprep.subr.mxu0 0.0
    %95 = vmatpush1.msra.mxu0 %v26
    %96 = vmatprep.subr.mxu0 0.0
    %97 = vmatpush1.msra.mxu0 %v27
    %98 = vmatprep.subr.mxu0 0.0
    %99 = vmatpush1.msra.mxu0 %v28
    %100 = vmatprep.subr.mxu0 0.0
    %101 = vmatpush1.msra.mxu0 %v29
    %102 = vmatprep.subr.mxu0 0.0
    %103 = vmatpush1.msra.mxu0 %v30
    %104 = vmatprep.subr.mxu0 0.0
    %105 = vmatpush1.msra.mxu0 %v31
    %106 = vmatprep.subr.mxu0 0.0
    %107 = vmatpush1.msra.mxu0 %v32
    %108 = vmatprep.subr.mxu0 0.0
    %109 = vmatpush1.msra.mxu0 %v33
    %110 = vmatprep.subr.mxu0 0.0
    %111 = vmatpush1.msra.mxu0 %v34
    %112 = vmatprep.subr.mxu0 0.0
    %113 = vmatpush1.msra.mxu0 %v35
    %114 = vmatprep.subr.mxu0 0.0
    %115 = vmatpush1.msra.mxu0 %v36
    %116 = vmatprep.subr.mxu0 0.0
    %117 = vmatpush1.msra.mxu0 %v37
    %118 = vmatprep.subr.mxu0 0.0
    %119 = vmatpush1.msra.mxu0 %v38
    %120 = vmatprep.subr.mxu0 0.0
    %121 = vmatpush1.msra.mxu0 %v39
    %122 = vmatprep.subr.mxu0 0.0
    %123 = vmatpush1.msra.mxu0 %v40
    %124 = vmatprep.subr.mxu0 0.0
    %125 = vmatpush1.msra.mxu0 %v41
    %126 = vmatprep.subr.mxu0 0.0
    %127 = vmatpush1.msra.mxu0 %v42
    %128 = vmatprep.subr.mxu0 0.0
    %129 = vmatpush1.msra.mxu0 %v43
    %130 = vmatprep.subr.mxu0 0.0
    %131 = vmatpush1.msra.mxu0 %v44
    %132 = vmatprep.subr.mxu0 0.0
    %133 = vmatpush1.msra.mxu0 %v45
    %134 = vmatprep.subr.mxu0 0.0
    %135 = vmatpush1.msra.mxu0 %v46
    %136 = vmatprep.subr.mxu0 0.0
    %137 = vmatpush1.msra.mxu0 %v47
    %138 = vmatprep.mubr.f32.mxu0 %v68
    %139 = vmatmul.mubr.f32.gmra.mrb[0].mxu0 %v60
    %v140 = vpop.f32.mrb[0].mxu0
    %v141 = vadd.f32 0.0, %v140
    %v142 = vpop.f32.mrb[0].mxu0
    %143 = vdwg.mxu0
    %144 = vmatprep.subr.mxu0 0.0
    %145 = vmatpush1.msra.mxu0 %v48
    %146 = vmatprep.subr.mxu0 0.0
    %147 = vmatpush1.msra.mxu0 %v49
    %148 = vmatprep.subr.mxu0 0.0
    %149 = vmatpush1.msra.mxu0 %v50
    %150 = vmatprep.subr.mxu0 0.0
    %151 = vmatpush1.msra.mxu0 %v51
    %152 = vmatprep.subr.mxu0 0.0
    %153 = vmatpush1.msra.mxu0 0.0
    %154 = vmatprep.subr.mxu0 0.0
    %155 = vmatpush1.msra.mxu0 0.0
    %156 = vmatprep.subr.mxu0 0.0
    %157 = vmatpush1.msra.mxu0 0.0
    %158 = vmatprep.subr.mxu0 0.0
    %159 = vmatpush1.msra.mxu0 0.0
    %160 = vmatprep.subr.mxu0 0.0
    %161 = vmatpush1.msra.mxu0 0.0
    %162 = vmatprep.subr.mxu0 0.0
    %163 = vmatpush1.msra.mxu0 0.0
    %164 = vmatprep.subr.mxu0 0.0
    %165 = vmatpush1.msra.mxu0 0.0
    %166 = vmatprep.subr.mxu0 0.0
    %167 = vmatpush1.msra.mxu0 0.0
    %168 = vmatprep.subr.mxu0 0.0
    %169 = vmatpush1.msra.mxu0 0.0
    %170 = vmatprep.subr.mxu0 0.0
    %171 = vmatpush1.msra.mxu0 0.0
    %172 = vmatprep.subr.mxu0 0.0
    %173 = vmatpush1.msra.mxu0 0.0
    %174 = vmatprep.subr.mxu0 0.0
    %175 = vmatpush1.msra.mxu0 0.0
    %176 = vmatprep.subr.mxu0 0.0
    %177 = vmatpush1.msra.mxu0 0.0
    %178 = vmatprep.subr.mxu0 0.0
    %179 = vmatpush1.msra.mxu0 0.0
    %180 = vmatprep.subr.mxu0 0.0
    %181 = vmatpush1.msra.mxu0 0.0
    %182 = vmatprep.subr.mxu0 0.0
    %183 = vmatpush1.msra.mxu0 0.0
    %184 = vmatprep.subr.mxu0 0.0
    %185 = vmatpush1.msra.mxu0 0.0
    %186 = vmatprep.subr.mxu0 0.0
    %187 = vmatpush1.msra.mxu0 0.0
    %188 = vmatprep.subr.mxu0 0.0
    %189 = vmatpush1.msra.mxu0 0.0
    %190 = vmatprep.subr.mxu0 0.0
    %191 = vmatpush1.msra.mxu0 0.0
    %192 = vmatprep.subr.mxu0 0.0
    %193 = vmatpush1.msra.mxu0 0.0
    %194 = vmatprep.subr.mxu0 0.0
    %195 = vmatpush1.msra.mxu0 0.0
    %196 = vmatprep.subr.mxu0 0.0
    %197 = vmatpush1.msra.mxu0 0.0
    %198 = vmatprep.subr.mxu0 0.0
    %199 = vmatpush1.msra.mxu0 0.0
    %200 = vmatprep.subr.mxu0 0.0
    %201 = vmatpush1.msra.mxu0 0.0
    %202 = vmatprep.subr.mxu0 0.0
    %203 = vmatpush1.msra.mxu0 0.0
    %204 = vmatprep.subr.mxu0 0.0
    %205 = vmatpush1.msra.mxu0 0.0
    %206 = vmatprep.subr.mxu0 0.0
    %207 = vmatpush1.msra.mxu0 0.0
    %208 = vmatprep.mubr.f32.mxu0 0.0
    %209 = vmatmul.mubr.f32.gmra.mrb[0].mxu0 %v72
    %v210 = vpop.f32.mrb[0].mxu0
    %v211 = vadd.f32 %v141, %v210
    %v212 = vpop.f32.mrb[0].mxu0
    %213 = vdwg.mxu0
    %215 = vrot.lane.b32.xlu0 %v211, 112
    %v216 = vpop.permute.xlu0 %215
    %v218 = vmax.f32 %v211, %v216
    %219 = vrot.lane.b32.xlu0 %v211, 96
    %v220 = vpop.permute.xlu0 %219
    %v222 = vmax.f32 %v218, %v220
    %v223 = vld [vmem:[%s2] sm:$0x1]
    %v225 = vlaneseq
    %v226 = vshrl.u32 %v225, 7
    %v227 = vsub.s32 0, %v226
    %v228 = vrot.slane %v223, %v227
    %v230 = vadd.f32 %v222, %v228
    %v231 = vmax.f32 %v230, 0.0
    %vm232 = vcmask 123904
    %233 = vst.msk [vmem:[#allocation2] sm:$0x3] %vm232, %v231
    // Predicated region
    $region14: #{tpu_custom_call.1} parent=1 // pred_check
      _
    $region15: #{tpu_custom_call.1} parent=1 // pred_check_branch
      %235 = sbr.rel (0) target = $region17
    $region16: #{tpu_custom_call.1} parent=1 // pred_region
      %s237 = ssub.s32 32, 32
      %238 = vsyncadd [#allocation3], %s237
      %s240 = sshll.u32 [#allocation2], 4
      %s241 = int_to_ptr.vmem [resolvable:$true] %s240
      %243 = dma.vmem_to_hbm [thread:$0]  %s241, 32, %s3, [#allocation3]
    $region17: #{tpu_custom_call.1} parent=1 // pred_fallthru
      _
    // Predicated region
    $region18: #{tpu_custom_call.1} parent=1 // pred_check
      _
    $region19: #{tpu_custom_call.1} parent=1 // pred_check_branch
      %245 = sbr.rel (0) target = $region21
    $region20: #{tpu_custom_call.1} parent=1 // pred_region
      %246 = dma.done [#allocation3], 32
    $region21: #{tpu_custom_call.1} parent=1 // pred_fallthru
      _
    %247 = vsyncpa [#allocation3], 1

</llo_original>
